<compile_context>
chip_gen: v6e
topology: v6e:2x2x1
jax: 0.10.0
libtpu: 0.0.40
codegen_flags: <defaults>
</compile_context>

<pallas_src>
import functools

import jax
import jax.numpy as jnp
from jax.experimental import pallas as pl
from jax.experimental.pallas import tpu as pltpu

IN_FEATURES = 45
OUT_FEATURES = 32
K_PAD = 128        # contraction dim padded to one full lane tile
N_OUT_PAD = 128    # output lanes padded so the store is lane-dense


def _fc_fused_kernel(x_ref, wt_ref, bmn_ref, o_ref):
    # x_ref:   (Np, 128)  row-padded, K-padded flattened input
    # wt_ref:  (128, 128) pre-transposed + zero-padded weight (K, N_out)
    # bmn_ref: (1, 128)   (bias - noise), zero-padded on lanes
    # o_ref:   (Np, 128)
    v2 = jnp.dot(x_ref[...], wt_ref[...],
                 preferred_element_type=jnp.float32) + bmn_ref[...]
    v4 = jnp.maximum(v2, 0.0)          # relu
    v5 = jnp.tanh(v4)                  # EUP transcendental
    # v5 >= 0 (tanh of a non-negative value), so v5 + abs(v5) == 2*v5 exactly
    o_ref[...] = (2.0 * v5).astype(o_ref.dtype)


@functools.partial(jax.jit, static_argnames=())
def model_forward(x_nchw, weight, bias, noise):
    """x_nchw: (B,C,H,W) f32; weight: (32,45); bias: (32,); noise: (1,32)."""
    # glue: torch.reshape(x1, (-1, 45)) — row-major flatten
    x2d = x_nchw.reshape(-1, IN_FEATURES).astype(jnp.float32)
    n = x2d.shape[0]
    n_pad = ((n + 7) // 8) * 8  # round rows up to a sublane multiple of 8

    # Zero-pad input rows/K so the kernel sees aligned (8,128) tiles.
    x_p = jnp.zeros((n_pad, K_PAD), jnp.float32).at[:n, :IN_FEATURES].set(x2d)

    # Pre-transpose the weight (done here once per call; fold into stored
    # params in a real model) and zero-pad to a clean (128, 128) RHS.
    wt_p = jnp.zeros((K_PAD, N_OUT_PAD), jnp.float32)
    wt_p = wt_p.at[:IN_FEATURES, :OUT_FEATURES].set(weight.T)

    # Fold bias and forward-time noise into one lane-padded constant.
    bmn = jnp.zeros((1, N_OUT_PAD), jnp.float32)
    bmn = bmn.at[:, :OUT_FEATURES].set(bias.reshape(1, OUT_FEATURES) - noise)

    cost = pl.CostEstimate(
        flops=2 * n_pad * K_PAD * N_OUT_PAD,
        transcendentals=n_pad * N_OUT_PAD,
        bytes_accessed=4 * (n_pad * K_PAD + K_PAD * N_OUT_PAD
                            + N_OUT_PAD + n_pad * N_OUT_PAD),
    )

    out_p = pl.pallas_call(
        _fc_fused_kernel,
        out_shape=jax.ShapeDtypeStruct((n_pad, N_OUT_PAD), jnp.float32),
        in_specs=[
            pl.BlockSpec(memory_space=pltpu.MemorySpace.VMEM),
            pl.BlockSpec(memory_space=pltpu.MemorySpace.VMEM),
            pl.BlockSpec(memory_space=pltpu.MemorySpace.VMEM),
        ],
        out_specs=pl.BlockSpec(memory_space=pltpu.MemorySpace.VMEM),
        cost_estimate=cost,
    )(x_p, wt_p, bmn)

    # Slice the padding back off (fuses under the same jit).
    return out_p[:n, :OUT_FEATURES]


if __name__ == "__main__":
    key = jax.random.PRNGKey(0)
    kx, kw, kb, kn = jax.random.split(key, 4)

    # input: (1, 3, 15, 15) -> flattens to (15, 45)
    x1 = jax.random.normal(kx, (1, 3, 15, 15), dtype=jnp.float32)

    # Linear(45, 32) params, deterministic init (uniform like torch default)
    bound = 1.0 / jnp.sqrt(45.0)
    weight = jax.random.uniform(kw, (OUT_FEATURES, IN_FEATURES),
                                minval=-bound, maxval=bound, dtype=jnp.float32)
    bias = jax.random.uniform(kb, (OUT_FEATURES,),
                              minval=-bound, maxval=bound, dtype=jnp.float32)

    # forward-time torch.randn(1, 32), made deterministic
    # TODO(synk): original model draws fresh noise every forward; here it is a
    # deterministic input for reproducibility.
    noise = jax.random.normal(kn, (1, OUT_FEATURES), dtype=jnp.float32)

    out = model_forward(x1, weight, bias, noise)
    out = jax.block_until_ready(out)

    # sanity check against pure-JAX reference using the ORIGINAL formula
    ref_v2 = x1.reshape(-1, IN_FEATURES) @ weight.T + bias
    ref_v4 = jnp.maximum(ref_v2 - noise, 0.0)
    ref_v5 = jnp.tanh(ref_v4)
    ref = ref_v5 + jnp.abs(ref_v5)
    assert out.shape == (15, OUT_FEATURES)
    assert jnp.allclose(out, ref, atol=1e-5), "mismatch vs reference"

    print("KERNEL_OK")
</pallas_src>

<mosaic_0001>
module attributes {stable_mosaic.version = 11 : i64} {
  func.func @_fc_fused_kernel(%arg0: memref<16x128xf32, #tpu.memory_space<vmem>>, %arg1: memref<128x128xf32, #tpu.memory_space<vmem>>, %arg2: memref<1x128xf32, #tpu.memory_space<vmem>>, %arg3: memref<16x128xf32, #tpu.memory_space<vmem>>) attributes {dimension_semantics = [], scalar_prefetch = 0 : i64, scratch_operands = 0 : i64, tpu.core_type = #tpu.core_type<tc>} {
    %c0 = arith.constant 0 : index
    %c0_0 = arith.constant 0 : index
    %0 = vector.load %arg0[%c0, %c0_0] : memref<16x128xf32, #tpu.memory_space<vmem>>, vector<16x128xf32>
    %c0_1 = arith.constant 0 : index
    %c0_2 = arith.constant 0 : index
    %1 = vector.load %arg1[%c0_1, %c0_2] : memref<128x128xf32, #tpu.memory_space<vmem>>, vector<128x128xf32>
    %cst = arith.constant dense<0.000000e+00> : vector<16x128xf32>
    %2 = tpu.matmul %0, %1, %cst {dimension_numbers = #tpu.dot_dimension_numbers<[1], [0], [0], [1], [0, 0, 1, 1], [], []>} : vector<16x128xf32>, vector<128x128xf32>, vector<16x128xf32> -> vector<16x128xf32>
    %c0_3 = arith.constant 0 : index
    %c0_4 = arith.constant 0 : index
    %3 = vector.load %arg2[%c0_3, %c0_4] : memref<1x128xf32, #tpu.memory_space<vmem>>, vector<1x128xf32>
    %4 = vector.broadcast %3 : vector<1x128xf32> to vector<16x128xf32>
    %5 = arith.addf %2, %4 : vector<16x128xf32>
    %cst_5 = arith.constant 0.000000e+00 : f32
    %6 = vector.broadcast %cst_5 : f32 to vector<16x128xf32>
    %7 = arith.maximumf %5, %6 : vector<16x128xf32>
    %8 = math.tanh %7 : vector<16x128xf32>
    %cst_6 = arith.constant 2.000000e+00 : f32
    %9 = vector.broadcast %cst_6 : f32 to vector<16x128xf32>
    %10 = arith.mulf %9, %8 : vector<16x128xf32>
    %c0_7 = arith.constant 0 : index
    %c0_8 = arith.constant 0 : index
    %11 = vector.load %arg3[%c0_7, %c0_8] : memref<16x128xf32, #tpu.memory_space<vmem>>, vector<16x128xf32>
    tpu.vector_store %arg3[%c0_7, %c0_8], %10 {strides = array<i32>} : memref<16x128xf32, #tpu.memory_space<vmem>>, vector<16x128xf32>,
    return
  }
}

</mosaic_0001>

<llo_original>
// kernel: model_forward.1
$region0: #{model_forward.1}
  #allocation0 [shape = 'u32[]', space=smem, size = 0x4, offset = 0x4, fixed_abs, tag = 'smem constant byte address 0x4 - core index']
  #allocation1 [shape = 'u32[144,128]{1,0:T(1,128)}', space=vmem, size = 0x12000, scoped, tag = 'internal scratch']
  %s0 = inlined_call_operand.vmem [shape: f32[16,128], index: 0, kind: input, shape index: {}]
  %s1 = inlined_call_operand.vmem [shape: f32[128,128], index: 1, kind: input, shape index: {}]
  %s2 = inlined_call_operand.vmem [shape: f32[1,128], index: 2, kind: input, shape index: {}]
  %s3 = inlined_call_operand.hbm [shape: f32[16,128], index: 3, kind: output, shape index: {}]
  %s4 = sld [smem:[#allocation0]]
  $region22: #{model_forward.1} parent=0
    _
  %s6 = ssub.s32 1, %s4
  %s7 = scalar_select 0, %s6, %s4
  $region1: #{model_forward.1} parent=0
    #allocation2 [shape = 'u8[8192]{0}', space=vmem, size = 0x2000, scoped, tag = 'output window, operand 0, single buffered']
    #allocation3 [shape = 's32[1]{0}', space=sflag, size = 0x4, scoped, tag = 'scoped memory for model_forward.1']
    %8 = vsyncpa [#allocation3], 0
    // Predicated region
    $region2: #{model_forward.1} parent=1 // pred_check
      _
    $region3: #{model_forward.1} parent=1 // pred_check_branch
      %10 = sbr.rel (0) target = $region5
    $region4: #{model_forward.1} parent=1 // pred_region
      _
    $region5: #{model_forward.1} parent=1 // pred_fallthru
      _
    // Predicated region
    $region6: #{model_forward.1} parent=1 // pred_check
      _
    $region7: #{model_forward.1} parent=1 // pred_check_branch
      %12 = sbr.rel (0) target = $region9
    $region8: #{model_forward.1} parent=1 // pred_region
      _
    $region9: #{model_forward.1} parent=1 // pred_fallthru
      _
    // Predicated region
    $region10: #{model_forward.1} parent=1 // pred_check
      _
    $region11: #{model_forward.1} parent=1 // pred_check_branch
      %14 = sbr.rel (0) target = $region13
    $region12: #{model_forward.1} parent=1 // pred_region
      _
    $region13: #{model_forward.1} parent=1 // pred_fallthru
      _
    %v15 = vld [vmem:[%s0] sm:$0xff]
    %v16 = vld [vmem:[%s0 + $0x8] sm:$0xff]
    %v17 = vld [vmem:[%s1] sm:$0xff]
    %v18 = vld [vmem:[%s1 + $0x8] sm:$0xff]
    %v19 = vld [vmem:[%s1 + $0x10] sm:$0xff]
    %v20 = vld [vmem:[%s1 + $0x18] sm:$0xff]
    %v21 = vld [vmem:[%s1 + $0x20] sm:$0xff]
    %v22 = vld [vmem:[%s1 + $0x28] sm:$0xff]
    %v23 = vld [vmem:[%s1 + $0x30] sm:$0xff]
    %v24 = vld [vmem:[%s1 + $0x38] sm:$0xff]
    %v25 = vld [vmem:[%s1 + $0x40] sm:$0xff]
    %v26 = vld [vmem:[%s1 + $0x48] sm:$0xff]
    %v27 = vld [vmem:[%s1 + $0x50] sm:$0xff]
    %v28 = vld [vmem:[%s1 + $0x58] sm:$0xff]
    %v29 = vld [vmem:[%s1 + $0x60] sm:$0xff]
    %v30 = vld [vmem:[%s1 + $0x68] sm:$0xff]
    %v31 = vld [vmem:[%s1 + $0x70] sm:$0xff]
    %v32 = vld [vmem:[%s1 + $0x78] sm:$0xff]
    %v33 = vld [vmem:[%s2] sm:$0x1]
    %v35 = vlaneseq
    %v36 = vshrl.u32 %v35, 7
    %v37 = vsub.s32 0, %v36
    %v38 = vrot.slane %v33, %v37
    %40 = vmatprep.subr.mxu0 0.0
    %41 = vmatpush1.msra.mxu0 %v32
    %42 = vmatprep.subr.mxu0 0.0
    %43 = vmatpush1.msra.mxu0 %v31
    %44 = vmatprep.subr.mxu0 0.0
    %45 = vmatpush1.msra.mxu0 %v30
    %46 = vmatprep.subr.mxu0 0.0
    %47 = vmatpush1.msra.mxu0 %v29
    %48 = vmatprep.subr.mxu0 0.0
    %49 = vmatpush1.msra.mxu0 %v28
    %50 = vmatprep.subr.mxu0 0.0
    %51 = vmatpush1.msra.mxu0 %v27
    %52 = vmatprep.subr.mxu0 0.0
    %53 = vmatpush1.msra.mxu0 %v26
    %54 = vmatprep.subr.mxu0 0.0
    %55 = vmatpush1.msra.mxu0 %v25
    %56 = vmatprep.subr.mxu0 0.0
    %57 = vmatpush1.msra.mxu0 %v24
    %58 = vmatprep.subr.mxu0 0.0
    %59 = vmatpush1.msra.mxu0 %v23
    %60 = vmatprep.subr.mxu0 0.0
    %61 = vmatpush1.msra.mxu0 %v22
    %62 = vmatprep.subr.mxu0 0.0
    %63 = vmatpush1.msra.mxu0 %v21
    %64 = vmatprep.subr.mxu0 0.0
    %65 = vmatpush1.msra.mxu0 %v20
    %66 = vmatprep.subr.mxu0 0.0
    %67 = vmatpush1.msra.mxu0 %v19
    %68 = vmatprep.subr.mxu0 0.0
    %69 = vmatpush1.msra.mxu0 %v18
    %70 = vmatprep.subr.mxu0 0.0
    %71 = vmatpush1.msra.mxu0 %v17
    %72 = vmatprep.subr.mxu0 0.0
    %73 = vmatpush2.msra.mxu0 0.0
    %74 = vmatprep.subr.mxu0 0.0
    %75 = vmatpush2.msra.mxu0 0.0
    %76 = vmatprep.subr.mxu0 0.0
    %77 = vmatpush2.msra.mxu0 0.0
    %78 = vmatprep.subr.mxu0 0.0
    %79 = vmatpush2.msra.mxu0 0.0
    %80 = vmatprep.subr.mxu0 0.0
    %81 = vmatpush2.msra.mxu0 0.0
    %82 = vmatprep.subr.mxu0 0.0
    %83 = vmatpush2.msra.mxu0 0.0
    %84 = vmatprep.subr.mxu0 0.0
    %85 = vmatpush2.msra.mxu0 0.0
    %86 = vmatprep.subr.mxu0 0.0
    %87 = vmatpush2.msra.mxu0 0.0
    %88 = vmatprep.subr.mxu0 0.0
    %89 = vmatpush2.msra.mxu0 0.0
    %90 = vmatprep.subr.mxu0 0.0
    %91 = vmatpush2.msra.mxu0 0.0
    %92 = vmatprep.subr.mxu0 0.0
    %93 = vmatpush2.msra.mxu0 0.0
    %94 = vmatprep.subr.mxu0 0.0
    %95 = vmatpush2.msra.mxu0 0.0
    %96 = vmatprep.subr.mxu0 0.0
    %97 = vmatpush2.msra.mxu0 0.0
    %98 = vmatprep.subr.mxu0 0.0
    %99 = vmatpush2.msra.mxu0 0.0
    %100 = vmatprep.subr.mxu0 0.0
    %101 = vmatpush2.msra.mxu0 0.0
    %102 = vmatprep.subr.mxu0 0.0
    %103 = vmatpush2.msra.mxu0 0.0
    %104 = vmatprep.mubr.f32.mxu0 0.0
    %105 = vmatmul.mubr.f32.gmra.mxu0 %v15
    %v106 = vpop.f32.mrf.mxu0
    %v107 = vadd.f32 %v38, %v106
    %v108 = vpop.f32.mrf.mxu0
    %109 = vmatprep.mubr.f32.mxu0 0.0
    %110 = vmatmul.mubr.f32.gmra.mxu0 %v16
    %v111 = vpop.f32.mrf.mxu0
    %v112 = vadd.f32 %v38, %v111
    %v113 = vpop.f32.mrf.mxu0
    %114 = vdwg.mxu0
    %v115 = vmax.f32 %v107, 0.0
    %v116 = vmax.f32 %v112, 0.0
    %v117 = vtanh.pop %v115
    %v118 = vtanh.pop %v116
    %v119 = vmul.f32 %v117, 2.0
    %v120 = vmul.f32 %v118, 2.0
    %121 = vst [vmem:[#allocation2] sm:$0xff] %v119
    %122 = vst [vmem:[#allocation2 + $0x8] sm:$0xff] %v120
    // Predicated region
    $region14: #{model_forward.1} parent=1 // pred_check
      _
    $region15: #{model_forward.1} parent=1 // pred_check_branch
      %124 = sbr.rel (0) target = $region17
    $region16: #{model_forward.1} parent=1 // pred_region
      %s126 = ssub.s32 256, 256
      %127 = vsyncadd [#allocation3], %s126
      %s128 = sshll.u32 [#allocation2], 4
      %s129 = int_to_ptr.vmem [resolvable:$true] %s128
      %134 = dma.vmem_to_hbm [thread:$0]  %s129, 256, %s3, [#allocation3], 128, 128, 8
    $region17: #{model_forward.1} parent=1 // pred_fallthru
      _
    // Predicated region
    $region18: #{model_forward.1} parent=1 // pred_check
      _
    $region19: #{model_forward.1} parent=1 // pred_check_branch
      %136 = sbr.rel (0) target = $region21
    $region20: #{model_forward.1} parent=1 // pred_region
      %137 = dma.done [#allocation3], 256
    $region21: #{model_forward.1} parent=1 // pred_fallthru
      _
    %138 = vsyncpa [#allocation3], 1

</llo_original>
